<compile_context>
chip_gen: v7x
topology: tpu7x:2x2x1
jax: 0.10.0
libtpu: 0.0.40
codegen_flags: <defaults>
</compile_context>

<pallas_src>
import jax
import jax.numpy as jnp
from jax.experimental import pallas as pl
from jax.experimental.pallas import tpu as pltpu


CMID = 32                  # conv1 out-channels
COUT_PAD = 32              # conv3 out-channels 28 padded to 32 lanes
K1_TAP = 16                # per-tap conv1 patch size 12 (=2*2*3) padded to 16
K_FUSED = 4 * K1_TAP       # 64: 4 conv3 taps folded into the K/lane dimension
K3 = 4 * CMID              # 128: conv3 reduction dim (tap, cmid) -> full MXU depth


# ----------------------------- Pallas kernel --------------------------------
def fused_conv_kernel(p_ref, w1_ref, w3_ref, o_ref):
    """p_ref:  (1, tile_m3, 64)  bf16 conv1 patches, 4 conv3 taps folded in K
       w1_ref: (64, 128)         bf16 block-diagonal conv1 weight
       w3_ref: (128, 32)         bf16 conv3 weight, (tap, cmid)-major rows
       o_ref:  (1, tile_m3, 32)  f32  tanh(relu(conv3(relu(conv1(x)))))"""
    v2 = jnp.dot(p_ref[0], w1_ref[...], preferred_element_type=jnp.float32)
    v2 = jnp.maximum(v2, 0.0).astype(jnp.bfloat16)            # (tile_m3, 128)
    v5 = jnp.dot(v2, w3_ref[...], preferred_element_type=jnp.float32)
    o_ref[0] = jnp.tanh(jnp.maximum(v5, 0.0))
    # TODO(synk): on v5e, if the single vst slot binds, fold 4 output rows
    # into one 128-lane store row instead of the 32-lane store above.


def _round_up(x, m):
    return (x + m - 1) // m * m


# ------------------------------ model forward --------------------------------
@jax.jit
def model_forward(x_nchw, w1, w3):
    N, Cin, H, W = x_nchw.shape
    Cmid, Cout = w1.shape[0], w3.shape[0]                 # 32, 28
    h1 = (H - 2) // 2 + 1                                 # conv1 output H
    w1o = (W - 2) // 2 + 1                                # conv1 output W
    Ho3 = (h1 - 2) // 2 + 1                               # conv3 output H
    Wo3 = (w1o - 2) // 2 + 1                              # conv3 output W
    M3 = Ho3 * Wo3
    Kp = 4 * Cin                                          # 12

    # ---- im2col, taps folded into K (wrapper side; tiny fused XLA copy) ----
    # x index: H = 4*i3 + 2*di + kh ; W = 4*j3 + 2*dj + kw ; tap t = 2*di + dj
    # TODO(synk): for large H/W, feed x as a 6-D view and do this relayout in
    # the kernel's DMA (BlockSpec index_map) instead of materializing a copy.
    x = jnp.transpose(x_nchw, (0, 2, 3, 1))[:, :4 * Ho3, :4 * Wo3, :]
    x6 = x.reshape(N, Ho3, 2, 2, Wo3, 2, 2, Cin)          # (n,i3,di,kh,j3,dj,kw,c)
    p1 = x6.transpose(0, 1, 4, 2, 5, 3, 6, 7)             # (n,i3,j3,di,dj,kh,kw,c)
    p1 = p1.reshape(N, M3, 4, Kp)
    p1 = jnp.pad(p1, ((0, 0), (0, 0), (0, 0), (0, K1_TAP - Kp)))
    p1 = p1.reshape(N, M3, K_FUSED)                       # last dim = t*16 + k

    # Fixed M-tile with zero-padded ragged edge: bounded VMEM, live pipeline
    # for any M3; padded rows give tanh(relu(0)) = 0 and are sliced off below.
    M3_p8 = _round_up(max(M3, 8), 8)
    tile_m3 = min(256, M3_p8)
    M3_pad = _round_up(M3_p8, tile_m3)
    p1 = jnp.pad(p1, ((0, 0), (0, M3_pad - M3), (0, 0))).astype(jnp.bfloat16)

    # conv1 weight: OIHW -> per-tap (Kp, Cmid), K-padded, then 64x128 block-diag.
    w1m = jnp.transpose(w1, (2, 3, 1, 0)).reshape(Kp, Cmid)
    w1m = jnp.pad(w1m, ((0, K1_TAP - Kp), (0, 0)))                    # (16, 32)
    w1_bd = jnp.kron(jnp.eye(4, dtype=w1m.dtype), w1m).astype(jnp.bfloat16)

    # conv3 weight: OIHW -> (tap, cmid)-major (128, Cout), lanes padded to 32.
    w3m = jnp.transpose(w3, (2, 3, 1, 0)).reshape(4 * Cmid, Cout)
    w3m = jnp.pad(w3m, ((0, 0), (0, COUT_PAD - Cout))).astype(jnp.bfloat16)

    grid = (N, M3_pad // tile_m3)
    cost = pl.CostEstimate(
        flops=2 * N * M3_pad * (K_FUSED * K3 + K3 * COUT_PAD),
        transcendentals=N * M3_pad * COUT_PAD,
        bytes_accessed=(p1.size * 2 + w1_bd.size * 2 + w3m.size * 2
                        + N * M3_pad * COUT_PAD * 4),
    )

    out_flat = pl.pallas_call(
        fused_conv_kernel,
        out_shape=jax.ShapeDtypeStruct((N, M3_pad, COUT_PAD), jnp.float32),
        grid=grid,
        in_specs=[
            pl.BlockSpec((1, tile_m3, K_FUSED), lambda b, m: (b, m, 0)),
            pl.BlockSpec((K_FUSED, K3), lambda b, m: (0, 0)),
            pl.BlockSpec((K3, COUT_PAD), lambda b, m: (0, 0)),
        ],
        out_specs=pl.BlockSpec((1, tile_m3, COUT_PAD), lambda b, m: (b, m, 0)),
        compiler_params=pltpu.CompilerParams(
            dimension_semantics=("parallel", "parallel")),
        cost_estimate=cost,
    )(p1, w1_bd, w3m)

    out = out_flat[:, :M3, :Cout].reshape(N, Ho3, Wo3, Cout)
    return out.transpose(0, 3, 1, 2)                      # NHWC -> NCHW


# ------------------------------ reference check ------------------------------
def ref_forward(x, w1, w3):
    dn = ("NCHW", "OIHW", "NCHW")
    v1 = jax.lax.conv_general_dilated(x, w1, (2, 2), "VALID", dimension_numbers=dn)
    v2 = jnp.maximum(v1, 0.0)
    v5 = jax.lax.conv_general_dilated(v2, w3, (2, 2), "VALID", dimension_numbers=dn)
    return jnp.tanh(jnp.maximum(v5, 0.0))


if __name__ == "__main__":
    key = jax.random.PRNGKey(0)
    kx, k1, k3 = jax.random.split(key, 3)

    # Module-consistent small shapes. (The module's own 3x3 spatial input would
    # make conv3's output empty, so use a 16x16 spatial input.)
    x = jax.random.normal(kx, (2, 3, 16, 16), dtype=jnp.float32)
    w1 = 0.15 * jax.random.normal(k1, (32, 3, 2, 2), dtype=jnp.float32)
    w3 = 0.15 * jax.random.normal(k3, (28, 32, 2, 2), dtype=jnp.float32)

    out = jax.block_until_ready(model_forward(x, w1, w3))
    ref = jax.block_until_ready(ref_forward(x, w1, w3))

    assert out.shape == ref.shape == (2, 28, 4, 4), out.shape
    max_err = float(jnp.max(jnp.abs(out - ref)))
    # bf16 input/weight streams with f32 accumulation -> 2e-2 tolerance.
    assert jnp.allclose(out, ref, rtol=2e-2, atol=2e-2), max_err

    print("KERNEL_OK")
</pallas_src>

<mosaic_0001>
module attributes {stable_mosaic.version = 11 : i64} {
  func.func @fused_conv_kernel(%arg0: i32, %arg1: i32, %arg2: memref<1x16x64xbf16, #tpu.memory_space<vmem>>, %arg3: memref<64x128xbf16, #tpu.memory_space<vmem>>, %arg4: memref<128x32xbf16, #tpu.memory_space<vmem>>, %arg5: memref<1x16x32xf32, #tpu.memory_space<vmem>>) attributes {dimension_semantics = [#tpu.dimension_semantics<parallel>, #tpu.dimension_semantics<parallel>], iteration_bounds = array<i64: 2, 1>, scalar_prefetch = 0 : i64, scratch_operands = 0 : i64, tpu.core_type = #tpu.core_type<tc>, window_params = [{transform_indices = @transform_0, window_bounds = array<i64: 1, 16, 64>}, {pipeline_mode = #tpu.pipeline_mode<synchronous>, transform_indices = @transform_1, window_bounds = array<i64: 64, 128>}, {pipeline_mode = #tpu.pipeline_mode<synchronous>, transform_indices = @transform_2, window_bounds = array<i64: 128, 32>}, {transform_indices = @transform_3, window_bounds = array<i64: 1, 16, 32>}]} {
    %c0 = arith.constant 0 : index
    %c0_0 = arith.constant 0 : index
    %c0_1 = arith.constant 0 : index
    %0 = vector.load %arg2[%c0, %c0_0, %c0_1] : memref<1x16x64xbf16, #tpu.memory_space<vmem>>, vector<1x16x64xbf16>
    %1 = vector.shape_cast %0 : vector<1x16x64xbf16> to vector<16x64xbf16>
    %c0_2 = arith.constant 0 : index
    %c0_3 = arith.constant 0 : index
    %2 = vector.load %arg3[%c0_2, %c0_3] : memref<64x128xbf16, #tpu.memory_space<vmem>>, vector<64x128xbf16>
    %cst = arith.constant dense<0.000000e+00> : vector<16x128xf32>
    %3 = tpu.matmul %1, %2, %cst {dimension_numbers = #tpu.dot_dimension_numbers<[1], [0], [0], [1], [0, 0, 1, 1], [], []>} : vector<16x64xbf16>, vector<64x128xbf16>, vector<16x128xf32> -> vector<16x128xf32>
    %cst_4 = arith.constant 0.000000e+00 : f32
    %4 = vector.broadcast %cst_4 : f32 to vector<16x128xf32>
    %5 = arith.maximumf %3, %4 : vector<16x128xf32>
    %6 = arith.truncf %5 : vector<16x128xf32> to vector<16x128xbf16>
    %c0_5 = arith.constant 0 : index
    %c0_6 = arith.constant 0 : index
    %7 = vector.load %arg4[%c0_5, %c0_6] : memref<128x32xbf16, #tpu.memory_space<vmem>>, vector<128x32xbf16>
    %cst_7 = arith.constant dense<0.000000e+00> : vector<16x32xf32>
    %8 = tpu.matmul %6, %7, %cst_7 {dimension_numbers = #tpu.dot_dimension_numbers<[1], [0], [0], [1], [0, 0, 1, 1], [], []>} : vector<16x128xbf16>, vector<128x32xbf16>, vector<16x32xf32> -> vector<16x32xf32>
    %cst_8 = arith.constant 0.000000e+00 : f32
    %9 = vector.broadcast %cst_8 : f32 to vector<16x32xf32>
    %10 = arith.maximumf %8, %9 : vector<16x32xf32>
    %11 = math.tanh %10 : vector<16x32xf32>
    %c0_9 = arith.constant 0 : index
    %c0_10 = arith.constant 0 : index
    %c0_11 = arith.constant 0 : index
    %12 = vector.load %arg5[%c0_9, %c0_10, %c0_11] : memref<1x16x32xf32, #tpu.memory_space<vmem>>, vector<1x16x32xf32>
    %13 = vector.shape_cast %12 : vector<1x16x32xf32> to vector<16x32xf32>
    %14 = vector.shape_cast %11 : vector<16x32xf32> to vector<1x16x32xf32>
    tpu.vector_store %arg5[%c0_9, %c0_10, %c0_11], %14 {strides = array<i32>} : memref<1x16x32xf32, #tpu.memory_space<vmem>>, vector<1x16x32xf32>,
    return
  }
  func.func @transform_0(%arg0: i32, %arg1: i32) -> (i32, i32, i32) {
    %c0_i32 = arith.constant 0 : i32
    %c0_i32_0 = arith.constant 0 : i32
    return %arg0, %arg1, %c0_i32 : i32, i32, i32
  }
  func.func @transform_1(%arg0: i32, %arg1: i32) -> (i32, i32) {
    %c0_i32 = arith.constant 0 : i32
    %c0_i32_0 = arith.constant 0 : i32
    %c0_i32_1 = arith.constant 0 : i32
    return %c0_i32, %c0_i32_0 : i32, i32
  }
  func.func @transform_2(%arg0: i32, %arg1: i32) -> (i32, i32) {
    %c0_i32 = arith.constant 0 : i32
    %c0_i32_0 = arith.constant 0 : i32
    %c0_i32_1 = arith.constant 0 : i32
    return %c0_i32, %c0_i32_0 : i32, i32
  }
  func.func @transform_3(%arg0: i32, %arg1: i32) -> (i32, i32, i32) {
    %c0_i32 = arith.constant 0 : i32
    %c0_i32_0 = arith.constant 0 : i32
    return %arg0, %arg1, %c0_i32 : i32, i32, i32
  }
}

</mosaic_0001>

<llo_original>
// kernel: model_forward.1
$region0: #{model_forward.1}
  #allocation0 [shape = 'u32[]', space=smem, size = 0x4, offset = 0x4, fixed_abs, tag = 'smem constant byte address 0x4 - core index']
  #allocation1 [shape = 'u32[144,128]{1,0:T(1,128)}', space=vmem, size = 0x12000, scoped, tag = 'internal scratch']
  %s0 = inlined_call_operand.vmem [shape: bf16[2,16,64], index: 0, kind: input, shape index: {}]
  %s1 = inlined_call_operand.vmem [shape: bf16[64,128], index: 1, kind: input, shape index: {}]
  %s2 = inlined_call_operand.vmem [shape: bf16[128,32], index: 2, kind: input, shape index: {}]
  %s3 = inlined_call_operand.hbm [shape: f32[2,16,32], index: 3, kind: output, shape index: {}]
  %s4 = sld [smem:[#allocation0]]
  $region45: #{model_forward.1} parent=0
    _
  %s6 = ssub.s32 1, %s4
  %s7 = scalar_select 0, %s6, %s4
  $region1: #{model_forward.1} parent=0
    #allocation2 [shape = 'u8[16384]{0}', space=vmem, size = 0x4000, scoped, tag = 'output window, operand 0']
    #allocation3 [shape = 's32[2]{0}', space=sflag, size = 0x8, scoped, tag = 'scoped memory for model_forward.1']
    %8 = vsyncpa [#allocation3], 0
    %s9 = scalar_lea.sflag [#allocation3], 1
    %10 = vsyncpa %s9, 0
    loop: start=0, step=1, limit=4
    $region2: #{model_forward.1} parent=1 // loop_pre_header
      _
    $region3: #{model_forward.1} parent=1 // loop_header
      %s12 = sphi 0, %s16
      %p13 = scmp.ge.s32.totalorder %s12, 4
      %s19 = sphi 0, %s31
      %s20 = sphi 0, %s27
      %s21 = sphi 0, %s19
      %s22 = sphi 0, %s20
      %s23 = sphi 0, %s21
      %s24 = sphi 0, %s22
      %s36 = sphi 0, %s38
      %s39 = sphi 0, %s36
      %s40 = sphi 0, %s39
      %s56 = sphi 0, %s40
      %s60 = sphi 0, %s60
      %s62 = sphi 0, %s60
      %s63 = sphi 0, %s62
      %s77 = sphi 0, %s63
      %s81 = sphi 0, %s81
      %s83 = sphi 0, %s81
      %s84 = sphi 0, %s83
      %s98 = sphi 0, %s84
      %s106 = sphi 0, %s108
      %s109 = sphi 0, %s106
      %s110 = sphi 0, %s109
      %s126 = sphi 0, %s110
    $region4: #{model_forward.1} parent=1 // loop_header_branch
      %15 = sbr.rel (%p13) target = $region8
    $region5: #{model_forward.1} parent=1 // loop_body
      %s17 = ssub.s32 %s12, 1
      %s18 = ssub.s32 %s12, 2
      %s25 = sadd.s32 1, %s20
      %p26 = scmp.ge.s32.totalorder %s25, 1
      %s27 = scalar_select %p26, 0, %s25
      %s28 = sadd.s32 1, %s19
      %s29 = scalar_select %p26, %s28, %s19
      %p30 = scmp.ge.s32.totalorder %s29, 2
      %s31 = scalar_select %p30, 0, %s29
      %s32 = ssub.s32 %s19, %s31
      %s33 = ssub.s32 %s20, %s27
      %s34 = sor.u32 %s32, %s33
      %p35 = scmp.eq.s32.totalorder %s34, 0
      %s37 = sadd.s32 %s36, 1
      %s38 = scalar_select %p35, %s36, %s37
      %p41 = pneg %p35
      %p42 = scmp.eq.s32.totalorder %s12, 1
      %p43 = por %p41, %p42
      %p44 = scmp.ne.s32.totalorder %s36, %s39
      %p45 = scmp.eq.s32.totalorder %s12, 0
      %p46 = por %p44, %p45
      %p47 = scmp.ne.s32.totalorder %s36, %s39
      %p48 = scmp.eq.s32.totalorder %s17, 1
      %p49 = por %p47, %p48
      %p50 = scmp.ne.s32.totalorder %s39, %s40
      %p51 = scmp.eq.s32.totalorder %s17, 0
      %p52 = por %p50, %p51
      %p53 = scmp.ne.s32.totalorder %s39, %s40
      %p54 = scmp.eq.s32.totalorder %s18, 1
      %p55 = por %p53, %p54
      %p57 = scmp.ne.s32.totalorder %s40, %s56
      %p58 = scmp.eq.s32.totalorder %s18, 0
      %p59 = por %p57, %p58
      %s61 = sadd.s32 %s60, 1
      %p64 = scmp.eq.s32.totalorder %s12, 1
      %p65 = scmp.ne.s32.totalorder %s60, %s62
      %p66 = scmp.eq.s32.totalorder %s12, 0
      %p67 = por %p65, %p66
      %p68 = scmp.ne.s32.totalorder %s60, %s62
      %p69 = scmp.eq.s32.totalorder %s17, 1
      %p70 = por %p68, %p69
      %p71 = scmp.ne.s32.totalorder %s62, %s63
      %p72 = scmp.eq.s32.totalorder %s17, 0
      %p73 = por %p71, %p72
      %p74 = scmp.ne.s32.totalorder %s62, %s63
      %p75 = scmp.eq.s32.totalorder %s18, 1
      %p76 = por %p74, %p75
      %p78 = scmp.ne.s32.totalorder %s63, %s77
      %p79 = scmp.eq.s32.totalorder %s18, 0
      %p80 = por %p78, %p79
      %s82 = sadd.s32 %s81, 1
      %p85 = scmp.eq.s32.totalorder %s12, 1
      %p86 = scmp.ne.s32.totalorder %s81, %s83
      %p87 = scmp.eq.s32.totalorder %s12, 0
      %p88 = por %p86, %p87
      %p89 = scmp.ne.s32.totalorder %s81, %s83
      %p90 = scmp.eq.s32.totalorder %s17, 1
      %p91 = por %p89, %p90
      %p92 = scmp.ne.s32.totalorder %s83, %s84
      %p93 = scmp.eq.s32.totalorder %s17, 0
      %p94 = por %p92, %p93
      %p95 = scmp.ne.s32.totalorder %s83, %s84
      %p96 = scmp.eq.s32.totalorder %s18, 1
      %p97 = por %p95, %p96
      %p99 = scmp.ne.s32.totalorder %s84, %s98
      %p100 = scmp.eq.s32.totalorder %s18, 0
      %p101 = por %p99, %p100
      %s102 = ssub.s32 %s19, %s31
      %s103 = ssub.s32 %s20, %s27
      %s104 = sor.u32 %s102, %s103
      %p105 = scmp.eq.s32.totalorder %s104, 0
      %s107 = sadd.s32 %s106, 1
      %s108 = scalar_select %p105, %s106, %s107
      %p111 = pneg %p105
      %p112 = scmp.eq.s32.totalorder %s12, 1
      %p113 = por %p111, %p112
      %p114 = scmp.ne.s32.totalorder %s106, %s109
      %p115 = scmp.eq.s32.totalorder %s12, 0
      %p116 = por %p114, %p115
      %p117 = scmp.ne.s32.totalorder %s106, %s109
      %p118 = scmp.eq.s32.totalorder %s17, 1
      %p119 = por %p117, %p118
      %p120 = scmp.ne.s32.totalorder %s109, %s110
      %p121 = scmp.eq.s32.totalorder %s17, 0
      %p122 = por %p120, %p121
      %p123 = scmp.ne.s32.totalorder %s109, %s110
      %p124 = scmp.eq.s32.totalorder %s18, 1
      %p125 = por %p123, %p124
      %p127 = scmp.ne.s32.totalorder %s110, %s126
      %p128 = scmp.eq.s32.totalorder %s18, 0
      %p129 = por %p127, %p128
      %p130 = scmp.le.s32.totalorder 1, %s12
      %p131 = scmp.lt.s32.totalorder %s12, 3
      %p132 = pnand %p130, %p131
      %p133 = pneg %p132
      // Predicated region
      $region9: #{model_forward.1} parent=5 // pred_check
        _
      $region10: #{model_forward.1} parent=5 // pred_check_branch
        %135 = sbr.rel (%p132) target = $region12
      $region11: #{model_forward.1} parent=5 // pred_region
        %s136 = ssub.s32 %s12, 1
        // Predicated region
        $region13: #{model_forward.1} parent=11 // pred_check
          %p137 = pneg %p73
        $region14: #{model_forward.1} parent=11 // pred_check_branch
          %139 = sbr.rel (%p137) target = $region16
        $region15: #{model_forward.1} parent=11 // pred_region
          _
        $region16: #{model_forward.1} parent=11 // pred_fallthru
          _
        // Predicated region
        $region17: #{model_forward.1} parent=11 // pred_check
          %p140 = pneg %p94
        $region18: #{model_forward.1} parent=11 // pred_check_branch
          %142 = sbr.rel (%p140) target = $region20
        $region19: #{model_forward.1} parent=11 // pred_region
          _
        $region20: #{model_forward.1} parent=11 // pred_fallthru
          _
      $region12: #{model_forward.1} parent=5 // pred_fallthru
        _
      %p143 = scmp.lt.s32.totalorder %s12, 2
      // Predicated region
      $region21: #{model_forward.1} parent=5 // pred_check
        %p144 = pneg %p143
      $region22: #{model_forward.1} parent=5 // pred_check_branch
        %146 = sbr.rel (%p144) target = $region24
      $region23: #{model_forward.1} parent=5 // pred_region
        // Predicated region
        $region25: #{model_forward.1} parent=23 // pred_check
          %p147 = pneg %p46
        $region26: #{model_forward.1} parent=23 // pred_check_branch
          %149 = sbr.rel (%p147) target = $region28
        $region27: #{model_forward.1} parent=23 // pred_region
          %s150 = smul.u32 2, %s20
          %p151 = scmp.lt.s32.totalorder %s19, 1
          %s152 = scalar_select %p151, %s19, 1
          %p153 = scmp.lt.s32.totalorder %s150, 1
          %s154 = scalar_select %p153, %s150, 1
          %s155 = smul.addr %s152, 2
          %s156 = sadd.s32 %s154, %s155
          %s157 = smul.addr %s156, 4
          %s158 = scalar_lea.vmem %s0, %s157
          %s159 = smul.u32 2, %s20
        $region28: #{model_forward.1} parent=23 // pred_fallthru
          _
      $region24: #{model_forward.1} parent=5 // pred_fallthru
        _
      %p160 = scmp.le.s32.totalorder 1, %s12
      %p161 = scmp.lt.s32.totalorder %s12, 3
      %p162 = pnand %p160, %p161
      %p163 = pneg %p162
      // Predicated region
      $region29: #{model_forward.1} parent=5 // pred_check
        _
      $region30: #{model_forward.1} parent=5 // pred_check_branch
        %165 = sbr.rel (%p162) target = $region32
      $region31: #{model_forward.1} parent=5 // pred_region
        %s166 = ssub.s32 %s12, 1
        %s167 = smul.u32 2, %s22
        %p168 = scmp.lt.s32.totalorder %s21, 1
        %s169 = scalar_select %p168, %s21, 1
        %p170 = scmp.lt.s32.totalorder %s167, 1
        %s171 = scalar_select %p170, %s167, 1
        %s172 = smul.addr %s169, 2
        %s173 = sadd.s32 %s171, %s172
        %s174 = smul.addr %s173, 4
        %s175 = scalar_lea.vmem %s0, %s174
        %p176 = pneg %p52
        %p177 = pneg %p49
        %p178 = pneg %p73
        %p179 = pneg %p70
        %p180 = pneg %p94
        %p181 = pneg %p91
        %p182 = pneg %p122
        %p183 = pneg %p119
        %s184 = sand.u32 %s109, 1
        %s185 = scalar_lea.sflag [#allocation3], %s184
        %s186 = sand.u32 %s109, 1
        %s187 = smul.addr %s186, 16
        %s188 = scalar_lea.vmem [#allocation2], %s187
        %s189 = smul.u32 2, %s22
        %p190 = scmp.lt.s32.totalorder %s21, 1
        %s191 = scalar_select %p190, %s21, 1
        %p192 = scmp.lt.s32.totalorder %s189, 1
        %s193 = scalar_select %p192, %s189, 1
        %s194 = smul.addr %s191, 2
        %s195 = sadd.s32 %s193, %s194
        %s196 = smul.addr %s195, 4
        %s197 = scalar_lea.vmem %s0, %s196
        %s198 = smul.u32 2, %s22
        %s199 = smul.u32 2, %s22
        %v201 = vld [vmem:[%s197] sm:$0xf]
        %v202 = vld [vmem:[%s197 + $0x4] sm:$0xf]
        %v203 = vld [vmem:[%s1] sm:$0xf]
        %v204 = vld [vmem:[%s1 + $0x4] sm:$0xf]
        %v205 = vld [vmem:[%s1 + $0x8] sm:$0xf]
        %v206 = vld [vmem:[%s1 + $0xc] sm:$0xf]
        %v207 = vld [vmem:[%s1 + $0x10] sm:$0xf]
        %v208 = vld [vmem:[%s1 + $0x14] sm:$0xf]
        %v209 = vld [vmem:[%s1 + $0x18] sm:$0xf]
        %v210 = vld [vmem:[%s1 + $0x1c] sm:$0xf]
        %v213 = vunpack.c.l.b16 %v201
        %v214 = vunpack.c.l.b16 %v202
        %v215 = vpack.c.b16 %v214, %v213
        %v224 = vunpack.c.l.b16 %v203
        %v225 = vunpack.c.l.b16 %v204
        %v226 = vunpack.c.l.b16 %v205
        %v227 = vunpack.c.l.b16 %v206
        %v228 = vunpack.c.l.b16 %v207
        %v229 = vunpack.c.l.b16 %v208
        %v230 = vunpack.c.l.b16 %v209
        %v231 = vunpack.c.l.b16 %v210
        %v232 = vpack.c.b16 %v225, %v224
        %v233 = vpack.c.b16 %v227, %v226
        %v234 = vpack.c.b16 %v229, %v228
        %v235 = vpack.c.b16 %v231, %v230
        %vm240 = vcmask 523264
        %v242 = vsel %vm240, %v215, 0
        %244 = vmatprep.subr.bf16.mxu0 0
        %245 = vmatpush1.bf16.msra.mxu0 %v232
        %246 = vmatprep.subr.bf16.mxu0 0
        %247 = vmatpush1.bf16.msra.mxu0 %v233
        %248 = vmatprep.subr.bf16.mxu0 0
        %249 = vmatpush1.bf16.msra.mxu0 %v234
        %250 = vmatprep.subr.bf16.mxu0 0
        %251 = vmatpush1.bf16.msra.mxu0 %v235
        %252 = vmatprep.subr.bf16.mxu0 0
        %253 = vmatpush1.bf16.msra.mxu0 0
        %254 = vmatprep.subr.bf16.mxu0 0
        %255 = vmatpush1.bf16.msra.mxu0 0
        %256 = vmatprep.subr.bf16.mxu0 0
        %257 = vmatpush1.bf16.msra.mxu0 0
        %258 = vmatprep.subr.bf16.mxu0 0
        %259 = vmatpush1.bf16.msra.mxu0 0
        %260 = vmatprep.subr.bf16.mxu0 0
        %261 = vmatpush1.bf16.msra.mxu0 0
        %262 = vmatprep.subr.bf16.mxu0 0
        %263 = vmatpush1.bf16.msra.mxu0 0
        %264 = vmatprep.subr.bf16.mxu0 0
        %265 = vmatpush1.bf16.msra.mxu0 0
        %266 = vmatprep.subr.bf16.mxu0 0
        %267 = vmatpush1.bf16.msra.mxu0 0
        %268 = vmatprep.subr.bf16.mxu0 0
        %269 = vmatpush1.bf16.msra.mxu0 0
        %270 = vmatprep.subr.bf16.mxu0 0
        %271 = vmatpush1.bf16.msra.mxu0 0
        %272 = vmatprep.subr.bf16.mxu0 0
        %273 = vmatpush1.bf16.msra.mxu0 0
        %274 = vmatprep.subr.bf16.mxu0 0
        %275 = vmatpush1.bf16.msra.mxu0 0
        %276 = vmatprep.mubr.bf16.mxu0 0
        %277 = vmatmul.mubr.bf16.gmra.mrb[0].mxu0 %v242
        %v278 = vpop.f32.mrb[0].mxu0
        %v279 = vadd.f32 0.0, %v278
        %v280 = vpop.f32.mrb[0].mxu0
        %v281 = vpop.f32.mrb[0].mxu0
        %v282 = vadd.f32 0.0, %v281
        %v283 = vpop.f32.mrb[0].mxu0
        %284 = vdwg.mxu0
        %v285 = vmax.f32 %v279, 0.0
        %v286 = vmax.f32 %v282, 0.0
        %v287 = vpack.c.bf16 %v286, %v285
        %v288 = vld [vmem:[%s2] sm:$0xf]
        %v289 = vld [vmem:[%s2 + $0x4] sm:$0xf]
        %v290 = vld [vmem:[%s2 + $0x8] sm:$0xf]
        %v291 = vld [vmem:[%s2 + $0xc] sm:$0xf]
        %v292 = vld [vmem:[%s2 + $0x10] sm:$0xf]
        %v293 = vld [vmem:[%s2 + $0x14] sm:$0xf]
        %v294 = vld [vmem:[%s2 + $0x18] sm:$0xf]
        %v295 = vld [vmem:[%s2 + $0x1c] sm:$0xf]
        %v296 = vld [vmem:[%s2 + $0x20] sm:$0xf]
        %v297 = vld [vmem:[%s2 + $0x24] sm:$0xf]
        %v298 = vld [vmem:[%s2 + $0x28] sm:$0xf]
        %v299 = vld [vmem:[%s2 + $0x2c] sm:$0xf]
        %v300 = vld [vmem:[%s2 + $0x30] sm:$0xf]
        %v301 = vld [vmem:[%s2 + $0x34] sm:$0xf]
        %v302 = vld [vmem:[%s2 + $0x38] sm:$0xf]
        %v303 = vld [vmem:[%s2 + $0x3c] sm:$0xf]
        %v320 = vunpack.c.l.b16 %v288
        %v321 = vunpack.c.l.b16 %v289
        %v322 = vunpack.c.l.b16 %v290
        %v323 = vunpack.c.l.b16 %v291
        %v324 = vunpack.c.l.b16 %v292
        %v325 = vunpack.c.l.b16 %v293
        %v326 = vunpack.c.l.b16 %v294
        %v327 = vunpack.c.l.b16 %v295
        %v328 = vunpack.c.l.b16 %v296
        %v329 = vunpack.c.l.b16 %v297
        %v330 = vunpack.c.l.b16 %v298
        %v331 = vunpack.c.l.b16 %v299
        %v332 = vunpack.c.l.b16 %v300
        %v333 = vunpack.c.l.b16 %v301
        %v334 = vunpack.c.l.b16 %v302
        %v335 = vunpack.c.l.b16 %v303
        %v336 = vpack.c.b16 %v321, %v320
        %v337 = vpack.c.b16 %v323, %v322
        %v338 = vpack.c.b16 %v325, %v324
        %v339 = vpack.c.b16 %v327, %v326
        %v340 = vpack.c.b16 %v329, %v328
        %v341 = vpack.c.b16 %v331, %v330
        %v342 = vpack.c.b16 %v333, %v332
        %v343 = vpack.c.b16 %v335, %v334
        %352 = vmatprep.subr.bf16.mxu0 0
        %353 = vmatpush1.bf16.msra.mxu0 %v336
        %354 = vmatprep.subr.bf16.mxu0 0
        %355 = vmatpush1.bf16.msra.mxu0 %v337
        %356 = vmatprep.subr.bf16.mxu0 0
        %357 = vmatpush1.bf16.msra.mxu0 %v338
        %358 = vmatprep.subr.bf16.mxu0 0
        %359 = vmatpush1.bf16.msra.mxu0 %v339
        %360 = vmatprep.subr.bf16.mxu0 0
        %361 = vmatpush1.bf16.msra.mxu0 %v340
        %362 = vmatprep.subr.bf16.mxu0 0
        %363 = vmatpush1.bf16.msra.mxu0 %v341
        %364 = vmatprep.subr.bf16.mxu0 0
        %365 = vmatpush1.bf16.msra.mxu0 %v342
        %366 = vmatprep.subr.bf16.mxu0 0
        %367 = vmatpush1.bf16.msra.mxu0 %v343
        %368 = vmatprep.subr.bf16.mxu0 0
        %369 = vmatpush1.bf16.msra.mxu0 0
        %370 = vmatprep.subr.bf16.mxu0 0
        %371 = vmatpush1.bf16.msra.mxu0 0
        %372 = vmatprep.subr.bf16.mxu0 0
        %373 = vmatpush1.bf16.msra.mxu0 0
        %374 = vmatprep.subr.bf16.mxu0 0
        %375 = vmatpush1.bf16.msra.mxu0 0
        %376 = vmatprep.subr.bf16.mxu0 0
        %377 = vmatpush1.bf16.msra.mxu0 0
        %378 = vmatprep.subr.bf16.mxu0 0
        %379 = vmatpush1.bf16.msra.mxu0 0
        %380 = vmatprep.subr.bf16.mxu0 0
        %381 = vmatpush1.bf16.msra.mxu0 0
        %382 = vmatprep.subr.bf16.mxu0 0
        %383 = vmatpush1.bf16.msra.mxu0 0
        %384 = vmatprep.mubr.bf16.mxu0 0
        %385 = vmatmul.mubr.bf16.gmra.mrb[0].mxu0 %v287
        %v386 = vpop.f32.mrb[0].mxu0
        %v387 = vadd.f32 0.0, %v386
        %v388 = vpop.f32.mrb[0].mxu0
        %v389 = vpop.f32.mrb[0].mxu0
        %v390 = vadd.f32 0.0, %v389
        %v391 = vpop.f32.mrb[0].mxu0
        %392 = vdwg.mxu0
        %v393 = vmax.f32 %v387, 0.0
        %v394 = vmax.f32 %v390, 0.0
        %v395 = vtanh.pop %v393
        %v396 = vtanh.pop %v394
        %vm397 = vcmask 261120
        %398 = vst.msk [vmem:[%s188] sm:$0xff] %vm397, %v395
        %399 = vst.msk [vmem:[%s188 + $0x8] sm:$0xff] %vm397, %v396
        %s400 = sand.u32 %s109, 1
        %s401 = scalar_lea.sflag [#allocation3], %s400
        %s402 = sand.u32 %s109, 1
        %s403 = smul.addr %s402, 16
        %s404 = scalar_lea.vmem [#allocation2], %s403
        // Predicated region
        $region33: #{model_forward.1} parent=31 // pred_check
          %p405 = pneg %p119
        $region34: #{model_forward.1} parent=31 // pred_check_branch
          %407 = sbr.rel (%p405) target = $region36
        $region35: #{model_forward.1} parent=31 // pred_region
          %s408 = smul.u32 2, %s22
          %s410 = ssub.s32 256, 256
          %411 = vsyncadd %s401, %s410
          %s412 = smul.addr %s21, 2
          %s413 = sadd.s32 %s408, %s412
          %s414 = smul.addr %s413, 128
          %s415 = scalar_lea.hbm %s3, %s414
          %s416 = sshll.u32 %s404, 4
          %s417 = int_to_ptr.vmem [resolvable:$true] %s416
          %422 = dma.vmem_to_hbm [thread:$0]  %s417, 256, %s415, %s401, 128, 128, 8
        $region36: #{model_forward.1} parent=31 // pred_fallthru
          _
      $region32: #{model_forward.1} parent=5 // pred_fallthru
        _
      %p423 = scmp.le.s32.totalorder 2, %s12
      // Predicated region
      $region37: #{model_forward.1} parent=5 // pred_check
        %p424 = pneg %p423
      $region38: #{model_forward.1} parent=5 // pred_check_branch
        %426 = sbr.rel (%p424) target = $region40
      $region39: #{model_forward.1} parent=5 // pred_region
        %s427 = ssub.s32 %s12, 2
        // Predicated region
        $region41: #{model_forward.1} parent=39 // pred_check
          %p428 = pneg %p125
        $region42: #{model_forward.1} parent=39 // pred_check_branch
          %430 = sbr.rel (%p428) target = $region44
        $region43: #{model_forward.1} parent=39 // pred_region
          %s431 = sand.u32 %s110, 1
          %s432 = scalar_lea.sflag [#allocation3], %s431
          %s433 = sand.u32 %s110, 1
          %s434 = smul.addr %s433, 16
          %s435 = scalar_lea.vmem [#allocation2], %s434
          %436 = dma.done %s432, 256
        $region44: #{model_forward.1} parent=39 // pred_fallthru
          _
      $region40: #{model_forward.1} parent=5 // pred_fallthru
        _
    $region6: #{model_forward.1} parent=1 // loop_footer
      %s16 = sadd.s32 1, %s12
    $region7: #{model_forward.1} parent=1 // loop_footer_branch
      %11 = sbr.rel target = $region3
    $region8: #{model_forward.1} parent=1 // loop_exit
      _
    %437 = vsyncpa [#allocation3], 1
    %s438 = scalar_lea.sflag [#allocation3], 1
    %439 = vsyncpa %s438, 1

</llo_original>
